<compile_context>
chip_gen: v7x
topology: tpu7x:2x2x1
jax: 0.10.0
libtpu: 0.0.40
codegen_flags: <defaults>
</compile_context>

<pallas_src>
import functools

import jax
import jax.numpy as jnp
from jax.experimental import pallas as pl
from jax.experimental.pallas import tpu as pltpu


def _round_up(a: int, b: int) -> int:
    return (a + b - 1) // b * b


def _conv_bn_relu_kernel(p_ref, w_ref, s_ref, b_ref, o_ref, *, has_relu):
    # p_ref: (tm, K) im2col patches     w_ref: (K, Cout)
    # s_ref: (1, Cout) folded BN scale  b_ref: (1, Cout) folded BN+conv bias
    # o_ref: (tm, Cout)                 -> lane-dense output store
    acc = jnp.dot(p_ref[...], w_ref[...], preferred_element_type=jnp.float32)
    y = acc * s_ref[...] + b_ref[...]
    if has_relu:
        y = jnp.maximum(y, 0.0)
    o_ref[...] = y.astype(o_ref.dtype)


def conv_bn_relu(
    x,
    weight,
    conv_bias=None,
    *,
    stride=1,
    pad=0,
    dilation=1,
    groups=1,
    has_bn=True,
    gamma=None,
    beta=None,
    running_mean=None,
    running_var=None,
    bn_eps=1e-5,
    has_relu=True,
    tile_m=256,
):
    """x: (N, Cin, H, W); weight: (Cout, Cin, KH, KW) -> (N, Cout, Hout, Wout)."""
    assert groups == 1  # TODO(synk): grouped convolution not implemented in the Pallas path.
    N, Cin, H, W = x.shape
    Cout, Cin_w, KH, KW = weight.shape
    assert Cin_w == Cin

    Hout = (H + 2 * pad - dilation * (KH - 1) - 1) // stride + 1
    Wout = (W + 2 * pad - dilation * (KW - 1) - 1) // stride + 1
    K = Cin * KH * KW
    M = N * Hout * Wout

    # ---- im2col (pure JAX data movement; heavy compute stays in the kernel) ----
    xp = jnp.pad(x, ((0, 0), (0, 0), (pad, pad), (pad, pad)))
    cols = []
    for kh in range(KH):
        for kw in range(KW):
            h0 = kh * dilation
            w0 = kw * dilation
            cols.append(
                xp[
                    :,
                    :,
                    h0 : h0 + stride * (Hout - 1) + 1 : stride,
                    w0 : w0 + stride * (Wout - 1) + 1 : stride,
                ]
            )
    # (N, Cin, Hout, Wout, KH*KW) -> (N, Hout, Wout, Cin, KH*KW) -> (M, K)
    # K flattens as (Cin, KH, KW), matching weight.reshape(Cout, Cin*KH*KW).
    patches = jnp.stack(cols, axis=-1).transpose(0, 2, 3, 1, 4).reshape(M, K)
    w_mat = weight.reshape(Cout, K).T.astype(jnp.float32)  # (K, Cout)

    # ---- fold conv bias + BatchNorm (eval mode) into per-channel scale/bias ----
    if conv_bias is None:
        conv_bias_f = jnp.zeros((Cout,), jnp.float32)
    else:
        conv_bias_f = conv_bias.astype(jnp.float32)
    if has_bn:
        inv_std = 1.0 / jnp.sqrt(running_var.astype(jnp.float32) + bn_eps)
        scale = gamma.astype(jnp.float32) * inv_std
        bias = beta.astype(jnp.float32) + (conv_bias_f - running_mean.astype(jnp.float32)) * scale
    else:
        scale = jnp.ones((Cout,), jnp.float32)
        bias = conv_bias_f
    scale = scale.reshape(1, Cout)
    bias = bias.reshape(1, Cout)

    # ---- tile M; pad rows with zeros so blocks stay (8,128)-friendly ----
    tm = min(tile_m, _round_up(M, 8))
    tm = _round_up(tm, 8)
    M_pad = _round_up(M, tm)
    if M_pad != M:
        patches = jnp.pad(patches, ((0, M_pad - M), (0, 0)))

    out = pl.pallas_call(
        functools.partial(_conv_bn_relu_kernel, has_relu=has_relu),
        out_shape=jax.ShapeDtypeStruct((M_pad, Cout), jnp.float32),
        grid=(M_pad // tm,),
        in_specs=[
            pl.BlockSpec((tm, K), lambda i: (i, 0)),       # patches tile
            pl.BlockSpec((K, Cout), lambda i: (0, 0)),     # full weight (resident)
            pl.BlockSpec((1, Cout), lambda i: (0, 0)),     # folded BN scale
            pl.BlockSpec((1, Cout), lambda i: (0, 0)),     # folded BN/conv bias
        ],
        out_specs=pl.BlockSpec((tm, Cout), lambda i: (i, 0)),  # lane-dense output
        compiler_params=pltpu.CompilerParams(
            dimension_semantics=("parallel",),
        ),
    )(patches, w_mat, scale, bias)

    return out[:M].reshape(N, Hout, Wout, Cout).transpose(0, 3, 1, 2)


def _reference(x, weight, conv_bias, stride, pad, dilation, gamma, beta, mean, var, eps,
               has_bn, has_relu):
    y = jax.lax.conv_general_dilated(
        x,
        weight,
        window_strides=(stride, stride),
        padding=((pad, pad), (pad, pad)),
        rhs_dilation=(dilation, dilation),
        dimension_numbers=("NCHW", "OIHW", "NCHW"),
    )
    if conv_bias is not None:
        y = y + conv_bias[None, :, None, None]
    if has_bn:
        y = (y - mean[None, :, None, None]) / jnp.sqrt(var[None, :, None, None] + eps)
        y = y * gamma[None, :, None, None] + beta[None, :, None, None]
    if has_relu:
        y = jnp.maximum(y, 0.0)
    return y


if __name__ == "__main__":
    # ConvBnRelu(in_planes=4, out_planes=8, ksize=3, stride=1, pad=1), has_bias=False
    N, Cin, H, W = 2, 4, 16, 16
    Cout, KH, KW = 8, 3, 3
    stride, pad, dilation = 1, 1, 1
    bn_eps = 1e-5

    key = jax.random.PRNGKey(0)
    kx, kw, kg, kb, km, kv = jax.random.split(key, 6)
    x = jax.random.normal(kx, (N, Cin, H, W), dtype=jnp.float32)
    weight = jax.random.normal(kw, (Cout, Cin, KH, KW), dtype=jnp.float32) * 0.1
    gamma = jax.random.normal(kg, (Cout,), dtype=jnp.float32) * 0.2 + 1.0
    beta = jax.random.normal(kb, (Cout,), dtype=jnp.float32) * 0.1
    running_mean = jax.random.normal(km, (Cout,), dtype=jnp.float32) * 0.1
    running_var = jax.random.uniform(kv, (Cout,), dtype=jnp.float32, minval=0.5, maxval=1.5)

    out = conv_bn_relu(
        x, weight, None,
        stride=stride, pad=pad, dilation=dilation,
        has_bn=True, gamma=gamma, beta=beta,
        running_mean=running_mean, running_var=running_var, bn_eps=bn_eps,
        has_relu=True,
    )
    jax.block_until_ready(out)

    ref = _reference(x, weight, None, stride, pad, dilation,
                     gamma, beta, running_mean, running_var, bn_eps, True, True)
    assert out.shape == (N, Cout, H, W)
    assert jnp.allclose(out, ref, atol=1e-4, rtol=1e-4)

    # second config: stride 2, no BN, no ReLU (exercises the flag/fold paths)
    out2 = conv_bn_relu(
        x, weight, None,
        stride=2, pad=1, dilation=1,
        has_bn=False, has_relu=False,
    )
    jax.block_until_ready(out2)
    ref2 = _reference(x, weight, None, 2, 1, 1,
                      gamma, beta, running_mean, running_var, bn_eps, False, False)
    assert out2.shape == ref2.shape
    assert jnp.allclose(out2, ref2, atol=1e-4, rtol=1e-4)

    print("KERNEL_OK")
</pallas_src>

<mosaic_0001>
module attributes {stable_mosaic.version = 11 : i64} {
  func.func @_conv_bn_relu_kernel(%arg0: i32, %arg1: memref<256x36xf32, #tpu.memory_space<vmem>>, %arg2: memref<36x8xf32, #tpu.memory_space<vmem>>, %arg3: memref<1x8xf32, #tpu.memory_space<vmem>>, %arg4: memref<1x8xf32, #tpu.memory_space<vmem>>, %arg5: memref<256x8xf32, #tpu.memory_space<vmem>>) attributes {dimension_semantics = [#tpu.dimension_semantics<parallel>], iteration_bounds = array<i64: 2>, scalar_prefetch = 0 : i64, scratch_operands = 0 : i64, tpu.core_type = #tpu.core_type<tc>, window_params = [{transform_indices = @transform_0, window_bounds = array<i64: 256, 36>}, {pipeline_mode = #tpu.pipeline_mode<synchronous>, transform_indices = @transform_1, window_bounds = array<i64: 36, 8>}, {pipeline_mode = #tpu.pipeline_mode<synchronous>, transform_indices = @transform_2, window_bounds = array<i64: 1, 8>}, {pipeline_mode = #tpu.pipeline_mode<synchronous>, transform_indices = @transform_3, window_bounds = array<i64: 1, 8>}, {transform_indices = @transform_4, window_bounds = array<i64: 256, 8>}]} {
    %c0 = arith.constant 0 : index
    %c0_0 = arith.constant 0 : index
    %0 = vector.load %arg1[%c0, %c0_0] : memref<256x36xf32, #tpu.memory_space<vmem>>, vector<256x36xf32>
    %c0_1 = arith.constant 0 : index
    %c0_2 = arith.constant 0 : index
    %1 = vector.load %arg2[%c0_1, %c0_2] : memref<36x8xf32, #tpu.memory_space<vmem>>, vector<36x8xf32>
    %cst = arith.constant dense<0.000000e+00> : vector<256x8xf32>
    %2 = tpu.matmul %0, %1, %cst {dimension_numbers = #tpu.dot_dimension_numbers<[1], [0], [0], [1], [0, 0, 1, 1], [], []>} : vector<256x36xf32>, vector<36x8xf32>, vector<256x8xf32> -> vector<256x8xf32>
    %c0_3 = arith.constant 0 : index
    %c0_4 = arith.constant 0 : index
    %3 = vector.load %arg3[%c0_3, %c0_4] : memref<1x8xf32, #tpu.memory_space<vmem>>, vector<1x8xf32>
    %4 = vector.broadcast %3 : vector<1x8xf32> to vector<256x8xf32>
    %5 = arith.mulf %2, %4 : vector<256x8xf32>
    %c0_5 = arith.constant 0 : index
    %c0_6 = arith.constant 0 : index
    %6 = vector.load %arg4[%c0_5, %c0_6] : memref<1x8xf32, #tpu.memory_space<vmem>>, vector<1x8xf32>
    %7 = vector.broadcast %6 : vector<1x8xf32> to vector<256x8xf32>
    %8 = arith.addf %5, %7 : vector<256x8xf32>
    %cst_7 = arith.constant 0.000000e+00 : f32
    %9 = vector.broadcast %cst_7 : f32 to vector<256x8xf32>
    %10 = arith.maximumf %8, %9 : vector<256x8xf32>
    %c0_8 = arith.constant 0 : index
    %c0_9 = arith.constant 0 : index
    %11 = vector.load %arg5[%c0_8, %c0_9] : memref<256x8xf32, #tpu.memory_space<vmem>>, vector<256x8xf32>
    tpu.vector_store %arg5[%c0_8, %c0_9], %10 {strides = array<i32>} : memref<256x8xf32, #tpu.memory_space<vmem>>, vector<256x8xf32>,
    return
  }
  func.func @transform_0(%arg0: i32) -> (i32, i32) {
    %c0_i32 = arith.constant 0 : i32
    %c0_i32_0 = arith.constant 0 : i32
    return %arg0, %c0_i32 : i32, i32
  }
  func.func @transform_1(%arg0: i32) -> (i32, i32) {
    %c0_i32 = arith.constant 0 : i32
    %c0_i32_0 = arith.constant 0 : i32
    %c0_i32_1 = arith.constant 0 : i32
    return %c0_i32, %c0_i32_0 : i32, i32
  }
  func.func @transform_2(%arg0: i32) -> (i32, i32) {
    %c0_i32 = arith.constant 0 : i32
    %c0_i32_0 = arith.constant 0 : i32
    %c0_i32_1 = arith.constant 0 : i32
    return %c0_i32, %c0_i32_0 : i32, i32
  }
  func.func @transform_3(%arg0: i32) -> (i32, i32) {
    %c0_i32 = arith.constant 0 : i32
    %c0_i32_0 = arith.constant 0 : i32
    %c0_i32_1 = arith.constant 0 : i32
    return %c0_i32, %c0_i32_0 : i32, i32
  }
  func.func @transform_4(%arg0: i32) -> (i32, i32) {
    %c0_i32 = arith.constant 0 : i32
    %c0_i32_0 = arith.constant 0 : i32
    return %arg0, %c0_i32 : i32, i32
  }
}

</mosaic_0001>

<llo_original>
// kernel: tpu_custom_call.1
$region0: #{tpu_custom_call.1}
  #allocation0 [shape = 'u32[]', space=smem, size = 0x4, offset = 0x4, fixed_abs, tag = 'smem constant byte address 0x4 - core index']
  #allocation1 [shape = 'u32[144,128]{1,0:T(1,128)}', space=vmem, size = 0x12000, scoped, tag = 'internal scratch']
  %s0 = inlined_call_operand.vmem [shape: f32[512,36], index: 0, kind: input, shape index: {}]
  %s1 = inlined_call_operand.vmem [shape: f32[36,8], index: 1, kind: input, shape index: {}]
  %s2 = inlined_call_operand.vmem [shape: f32[1,8], index: 2, kind: input, shape index: {}]
  %s3 = inlined_call_operand.vmem [shape: f32[1,8], index: 3, kind: input, shape index: {}]
  %s4 = inlined_call_operand.vmem [shape: f32[512,8], index: 4, kind: output, shape index: {}]
  %s5 = sld [smem:[#allocation0]]
  $region49: #{tpu_custom_call.1} parent=0
    _
  %s7 = ssub.s32 1, %s5
  %s8 = scalar_select 0, %s7, %s5
  loop: start=0, step=1, limit=4
  $region2: #{tpu_custom_call.1} parent=0 // loop_pre_header
    _
  $region3: #{tpu_custom_call.1} parent=0 // loop_header
    %s10 = sphi 0, %s14
    %p11 = scmp.ge.s32.totalorder %s10, 4
    %s20 = sphi 0, %s22
    %s23 = sphi 0, %s20
    %s24 = sphi 0, %s23
    %s40 = sphi 0, %s24
    %s44 = sphi 0, %s44
    %s46 = sphi 0, %s44
    %s47 = sphi 0, %s46
    %s61 = sphi 0, %s47
    %s65 = sphi 0, %s65
    %s67 = sphi 0, %s65
    %s68 = sphi 0, %s67
    %s82 = sphi 0, %s68
    %s86 = sphi 0, %s86
    %s88 = sphi 0, %s86
    %s89 = sphi 0, %s88
    %s103 = sphi 0, %s89
    %s109 = sphi 0, %s111
    %s112 = sphi 0, %s109
    %s113 = sphi 0, %s112
    %s129 = sphi 0, %s113
  $region4: #{tpu_custom_call.1} parent=0 // loop_header_branch
    %13 = sbr.rel (%p11) target = $region8
  $region5: #{tpu_custom_call.1} parent=0 // loop_body
    %s15 = ssub.s32 %s10, 1
    %s16 = ssub.s32 %s10, 2
    %s17 = sadd.s32 %s10, 1
    %s18 = ssub.s32 %s10, %s17
    %p19 = scmp.eq.s32.totalorder %s18, 0
    %s21 = sadd.s32 %s20, 1
    %s22 = scalar_select %p19, %s20, %s21
    %p25 = pneg %p19
    %p26 = scmp.eq.s32.totalorder %s10, 1
    %p27 = por %p25, %p26
    %p28 = scmp.ne.s32.totalorder %s20, %s23
    %p29 = scmp.eq.s32.totalorder %s10, 0
    %p30 = por %p28, %p29
    %p31 = scmp.ne.s32.totalorder %s20, %s23
    %p32 = scmp.eq.s32.totalorder %s15, 1
    %p33 = por %p31, %p32
    %p34 = scmp.ne.s32.totalorder %s23, %s24
    %p35 = scmp.eq.s32.totalorder %s15, 0
    %p36 = por %p34, %p35
    %p37 = scmp.ne.s32.totalorder %s23, %s24
    %p38 = scmp.eq.s32.totalorder %s16, 1
    %p39 = por %p37, %p38
    %p41 = scmp.ne.s32.totalorder %s24, %s40
    %p42 = scmp.eq.s32.totalorder %s16, 0
    %p43 = por %p41, %p42
    %s45 = sadd.s32 %s44, 1
    %p48 = scmp.eq.s32.totalorder %s10, 1
    %p49 = scmp.ne.s32.totalorder %s44, %s46
    %p50 = scmp.eq.s32.totalorder %s10, 0
    %p51 = por %p49, %p50
    %p52 = scmp.ne.s32.totalorder %s44, %s46
    %p53 = scmp.eq.s32.totalorder %s15, 1
    %p54 = por %p52, %p53
    %p55 = scmp.ne.s32.totalorder %s46, %s47
    %p56 = scmp.eq.s32.totalorder %s15, 0
    %p57 = por %p55, %p56
    %p58 = scmp.ne.s32.totalorder %s46, %s47
    %p59 = scmp.eq.s32.totalorder %s16, 1
    %p60 = por %p58, %p59
    %p62 = scmp.ne.s32.totalorder %s47, %s61
    %p63 = scmp.eq.s32.totalorder %s16, 0
    %p64 = por %p62, %p63
    %s66 = sadd.s32 %s65, 1
    %p69 = scmp.eq.s32.totalorder %s10, 1
    %p70 = scmp.ne.s32.totalorder %s65, %s67
    %p71 = scmp.eq.s32.totalorder %s10, 0
    %p72 = por %p70, %p71
    %p73 = scmp.ne.s32.totalorder %s65, %s67
    %p74 = scmp.eq.s32.totalorder %s15, 1
    %p75 = por %p73, %p74
    %p76 = scmp.ne.s32.totalorder %s67, %s68
    %p77 = scmp.eq.s32.totalorder %s15, 0
    %p78 = por %p76, %p77
    %p79 = scmp.ne.s32.totalorder %s67, %s68
    %p80 = scmp.eq.s32.totalorder %s16, 1
    %p81 = por %p79, %p80
    %p83 = scmp.ne.s32.totalorder %s68, %s82
    %p84 = scmp.eq.s32.totalorder %s16, 0
    %p85 = por %p83, %p84
    %s87 = sadd.s32 %s86, 1
    %p90 = scmp.eq.s32.totalorder %s10, 1
    %p91 = scmp.ne.s32.totalorder %s86, %s88
    %p92 = scmp.eq.s32.totalorder %s10, 0
    %p93 = por %p91, %p92
    %p94 = scmp.ne.s32.totalorder %s86, %s88
    %p95 = scmp.eq.s32.totalorder %s15, 1
    %p96 = por %p94, %p95
    %p97 = scmp.ne.s32.totalorder %s88, %s89
    %p98 = scmp.eq.s32.totalorder %s15, 0
    %p99 = por %p97, %p98
    %p100 = scmp.ne.s32.totalorder %s88, %s89
    %p101 = scmp.eq.s32.totalorder %s16, 1
    %p102 = por %p100, %p101
    %p104 = scmp.ne.s32.totalorder %s89, %s103
    %p105 = scmp.eq.s32.totalorder %s16, 0
    %p106 = por %p104, %p105
    %s107 = ssub.s32 %s10, %s17
    %p108 = scmp.eq.s32.totalorder %s107, 0
    %s110 = sadd.s32 %s109, 1
    %s111 = scalar_select %p108, %s109, %s110
    %p114 = pneg %p108
    %p115 = scmp.eq.s32.totalorder %s10, 1
    %p116 = por %p114, %p115
    %p117 = scmp.ne.s32.totalorder %s109, %s112
    %p118 = scmp.eq.s32.totalorder %s10, 0
    %p119 = por %p117, %p118
    %p120 = scmp.ne.s32.totalorder %s109, %s112
    %p121 = scmp.eq.s32.totalorder %s15, 1
    %p122 = por %p120, %p121
    %p123 = scmp.ne.s32.totalorder %s112, %s113
    %p124 = scmp.eq.s32.totalorder %s15, 0
    %p125 = por %p123, %p124
    %p126 = scmp.ne.s32.totalorder %s112, %s113
    %p127 = scmp.eq.s32.totalorder %s16, 1
    %p128 = por %p126, %p127
    %p130 = scmp.ne.s32.totalorder %s113, %s129
    %p131 = scmp.eq.s32.totalorder %s16, 0
    %p132 = por %p130, %p131
    %p133 = scmp.le.s32.totalorder 1, %s10
    %p134 = scmp.lt.s32.totalorder %s10, 3
    %p135 = pnand %p133, %p134
    %p136 = pneg %p135
    // Predicated region
    $region9: #{tpu_custom_call.1} parent=5 // pred_check
      _
    $region10: #{tpu_custom_call.1} parent=5 // pred_check_branch
      %138 = sbr.rel (%p135) target = $region12
    $region11: #{tpu_custom_call.1} parent=5 // pred_region
      %s139 = ssub.s32 %s10, 1
      // Predicated region
      $region13: #{tpu_custom_call.1} parent=11 // pred_check
        %p140 = pneg %p57
      $region14: #{tpu_custom_call.1} parent=11 // pred_check_branch
        %142 = sbr.rel (%p140) target = $region16
      $region15: #{tpu_custom_call.1} parent=11 // pred_region
        _
      $region16: #{tpu_custom_call.1} parent=11 // pred_fallthru
        _
      // Predicated region
      $region17: #{tpu_custom_call.1} parent=11 // pred_check
        %p143 = pneg %p78
      $region18: #{tpu_custom_call.1} parent=11 // pred_check_branch
        %145 = sbr.rel (%p143) target = $region20
      $region19: #{tpu_custom_call.1} parent=11 // pred_region
        _
      $region20: #{tpu_custom_call.1} parent=11 // pred_fallthru
        _
      // Predicated region
      $region21: #{tpu_custom_call.1} parent=11 // pred_check
        %p146 = pneg %p99
      $region22: #{tpu_custom_call.1} parent=11 // pred_check_branch
        %148 = sbr.rel (%p146) target = $region24
      $region23: #{tpu_custom_call.1} parent=11 // pred_region
        _
      $region24: #{tpu_custom_call.1} parent=11 // pred_fallthru
        _
    $region12: #{tpu_custom_call.1} parent=5 // pred_fallthru
      _
    %p149 = scmp.lt.s32.totalorder %s10, 2
    // Predicated region
    $region25: #{tpu_custom_call.1} parent=5 // pred_check
      %p150 = pneg %p149
    $region26: #{tpu_custom_call.1} parent=5 // pred_check_branch
      %152 = sbr.rel (%p150) target = $region28
    $region27: #{tpu_custom_call.1} parent=5 // pred_region
      // Predicated region
      $region29: #{tpu_custom_call.1} parent=27 // pred_check
        %p153 = pneg %p30
      $region30: #{tpu_custom_call.1} parent=27 // pred_check_branch
        %155 = sbr.rel (%p153) target = $region32
      $region31: #{tpu_custom_call.1} parent=27 // pred_region
        %s156 = smul.u32 32, %s10
        %p157 = scmp.lt.s32.totalorder %s156, 63
        %s158 = scalar_select %p157, %s156, 63
        %s159 = smul.addr %s158, 8
        %s160 = scalar_lea.vmem %s0, %s159
        %s161 = smul.u32 32, %s10
      $region32: #{tpu_custom_call.1} parent=27 // pred_fallthru
        _
    $region28: #{tpu_custom_call.1} parent=5 // pred_fallthru
      _
    %p162 = scmp.le.s32.totalorder 1, %s10
    %p163 = scmp.lt.s32.totalorder %s10, 3
    %p164 = pnand %p162, %p163
    %p165 = pneg %p164
    // Predicated region
    $region33: #{tpu_custom_call.1} parent=5 // pred_check
      _
    $region34: #{tpu_custom_call.1} parent=5 // pred_check_branch
      %167 = sbr.rel (%p164) target = $region36
    $region35: #{tpu_custom_call.1} parent=5 // pred_region
      %s168 = ssub.s32 %s10, 1
      %s169 = smul.u32 32, %s15
      %p170 = scmp.lt.s32.totalorder %s169, 63
      %s171 = scalar_select %p170, %s169, 63
      %s172 = smul.addr %s171, 8
      %s173 = scalar_lea.vmem %s0, %s172
      %p174 = pneg %p36
      %p175 = pneg %p33
      %p176 = pneg %p57
      %p177 = pneg %p54
      %p178 = pneg %p78
      %p179 = pneg %p75
      %p180 = pneg %p99
      %p181 = pneg %p96
      %p182 = pneg %p125
      %p183 = pneg %p122
      %s184 = smul.u32 32, %s15
      %p185 = scmp.lt.s32.totalorder %s184, 63
      %s186 = scalar_select %p185, %s184, 63
      %s187 = smul.addr %s186, 8
      %s188 = scalar_lea.vmem %s4, %s187
      %s189 = smul.u32 32, %s15
      %p190 = scmp.lt.s32.totalorder %s189, 63
      %s191 = scalar_select %p190, %s189, 63
      %s192 = smul.addr %s191, 8
      %s193 = scalar_lea.vmem %s0, %s192
      %s194 = smul.u32 32, %s15
      %s195 = smul.u32 32, %s15
      %p196 = scmp.lt.s32.totalorder %s195, 63
      %s197 = scalar_select %p196, %s195, 63
      %s198 = smul.addr %s197, 8
      %s199 = scalar_lea.vmem %s4, %s198
      %s200 = smul.u32 32, %s15
      %v201 = vld [vmem:[%s193] sm:$0xff]
      %v202 = vld [vmem:[%s193 + $0x8] sm:$0xff]
      %v203 = vld [vmem:[%s193 + $0x10] sm:$0xff]
      %v204 = vld [vmem:[%s193 + $0x18] sm:$0xff]
      %v205 = vld [vmem:[%s193 + $0x20] sm:$0xff]
      %v206 = vld [vmem:[%s193 + $0x28] sm:$0xff]
      %v207 = vld [vmem:[%s193 + $0x30] sm:$0xff]
      %v208 = vld [vmem:[%s193 + $0x38] sm:$0xff]
      %v209 = vld [vmem:[%s193 + $0x40] sm:$0xff]
      %v210 = vld [vmem:[%s193 + $0x48] sm:$0xff]
      %v211 = vld [vmem:[%s193 + $0x50] sm:$0xff]
      %v212 = vld [vmem:[%s193 + $0x58] sm:$0xff]
      %v213 = vld [vmem:[%s193 + $0x60] sm:$0xff]
      %v214 = vld [vmem:[%s193 + $0x68] sm:$0xff]
      %v215 = vld [vmem:[%s193 + $0x70] sm:$0xff]
      %v216 = vld [vmem:[%s193 + $0x78] sm:$0xff]
      %v217 = vld [vmem:[%s193 + $0x80] sm:$0xff]
      %v218 = vld [vmem:[%s193 + $0x88] sm:$0xff]
      %v219 = vld [vmem:[%s193 + $0x90] sm:$0xff]
      %v220 = vld [vmem:[%s193 + $0x98] sm:$0xff]
      %v221 = vld [vmem:[%s193 + $0xa0] sm:$0xff]
      %v222 = vld [vmem:[%s193 + $0xa8] sm:$0xff]
      %v223 = vld [vmem:[%s193 + $0xb0] sm:$0xff]
      %v224 = vld [vmem:[%s193 + $0xb8] sm:$0xff]
      %v225 = vld [vmem:[%s193 + $0xc0] sm:$0xff]
      %v226 = vld [vmem:[%s193 + $0xc8] sm:$0xff]
      %v227 = vld [vmem:[%s193 + $0xd0] sm:$0xff]
      %v228 = vld [vmem:[%s193 + $0xd8] sm:$0xff]
      %v229 = vld [vmem:[%s193 + $0xe0] sm:$0xff]
      %v230 = vld [vmem:[%s193 + $0xe8] sm:$0xff]
      %v231 = vld [vmem:[%s193 + $0xf0] sm:$0xff]
      %v232 = vld [vmem:[%s193 + $0xf8] sm:$0xff]
      %v233 = vld [vmem:[%s1] sm:$0xff]
      %v234 = vld [vmem:[%s1 + $0x8] sm:$0xff]
      %v235 = vld [vmem:[%s1 + $0x10] sm:$0xff]
      %v236 = vld [vmem:[%s1 + $0x18] sm:$0xff]
      %v237 = vld [vmem:[%s1 + $0x20] sm:$0xf]
      %vm238 = vcmask 293888
      %v240 = vsel %vm238, %v201, 0
      %v243 = vsel %vm238, %v202, 0
      %v246 = vsel %vm238, %v203, 0
      %v249 = vsel %vm238, %v204, 0
      %v252 = vsel %vm238, %v205, 0
      %v255 = vsel %vm238, %v206, 0
      %v258 = vsel %vm238, %v207, 0
      %v261 = vsel %vm238, %v208, 0
      %v264 = vsel %vm238, %v209, 0
      %v267 = vsel %vm238, %v210, 0
      %v270 = vsel %vm238, %v211, 0
      %v273 = vsel %vm238, %v212, 0
      %v276 = vsel %vm238, %v213, 0
      %v279 = vsel %vm238, %v214, 0
      %v282 = vsel %vm238, %v215, 0
      %v285 = vsel %vm238, %v216, 0
      %v288 = vsel %vm238, %v217, 0
      %v291 = vsel %vm238, %v218, 0
      %v294 = vsel %vm238, %v219, 0
      %v297 = vsel %vm238, %v220, 0
      %v300 = vsel %vm238, %v221, 0
      %v303 = vsel %vm238, %v222, 0
      %v306 = vsel %vm238, %v223, 0
      %v309 = vsel %vm238, %v224, 0
      %v312 = vsel %vm238, %v225, 0
      %v315 = vsel %vm238, %v226, 0
      %v318 = vsel %vm238, %v227, 0
      %v321 = vsel %vm238, %v228, 0
      %v324 = vsel %vm238, %v229, 0
      %v327 = vsel %vm238, %v230, 0
      %v330 = vsel %vm238, %v231, 0
      %v333 = vsel %vm238, %v232, 0
      %vm335 = vcmask 1043456
      %v337 = vsel %vm335, %v237, 0
      %339 = vmatprep.subr.mxu0 0.0
      %340 = vmatpush1.msra.mxu0 %v233
      %341 = vmatprep.subr.mxu0 0.0
      %342 = vmatpush1.msra.mxu0 %v234
      %343 = vmatprep.subr.mxu0 0.0
      %344 = vmatpush1.msra.mxu0 %v235
      %345 = vmatprep.subr.mxu0 0.0
      %346 = vmatpush1.msra.mxu0 %v236
      %347 = vmatprep.subr.mxu0 0.0
      %348 = vmatpush1.msra.mxu0 %v337
      %349 = vmatprep.subr.mxu0 0.0
      %350 = vmatpush1.msra.mxu0 0.0
      %351 = vmatprep.subr.mxu0 0.0
      %352 = vmatpush1.msra.mxu0 0.0
      %353 = vmatprep.subr.mxu0 0.0
      %354 = vmatpush1.msra.mxu0 0.0
      %355 = vmatprep.subr.mxu0 0.0
      %356 = vmatpush1.msra.mxu0 0.0
      %357 = vmatprep.subr.mxu0 0.0
      %358 = vmatpush1.msra.mxu0 0.0
      %359 = vmatprep.subr.mxu0 0.0
      %360 = vmatpush1.msra.mxu0 0.0
      %361 = vmatprep.subr.mxu0 0.0
      %362 = vmatpush1.msra.mxu0 0.0
      %363 = vmatprep.subr.mxu0 0.0
      %364 = vmatpush1.msra.mxu0 0.0
      %365 = vmatprep.subr.mxu0 0.0
      %366 = vmatpush1.msra.mxu0 0.0
      %367 = vmatprep.subr.mxu0 0.0
      %368 = vmatpush1.msra.mxu0 0.0
      %369 = vmatprep.subr.mxu0 0.0
      %370 = vmatpush1.msra.mxu0 0.0
      %371 = vmatprep.subr.mxu0 0.0
      %372 = vmatpush1.msra.mxu0 0.0
      %373 = vmatprep.subr.mxu0 0.0
      %374 = vmatpush1.msra.mxu0 0.0
      %375 = vmatprep.subr.mxu0 0.0
      %376 = vmatpush1.msra.mxu0 0.0
      %377 = vmatprep.subr.mxu0 0.0
      %378 = vmatpush1.msra.mxu0 0.0
      %379 = vmatprep.subr.mxu0 0.0
      %380 = vmatpush1.msra.mxu0 0.0
      %381 = vmatprep.subr.mxu0 0.0
      %382 = vmatpush1.msra.mxu0 0.0
      %383 = vmatprep.subr.mxu0 0.0
      %384 = vmatpush1.msra.mxu0 0.0
      %385 = vmatprep.subr.mxu0 0.0
      %386 = vmatpush1.msra.mxu0 0.0
      %387 = vmatprep.subr.mxu0 0.0
      %388 = vmatpush1.msra.mxu0 0.0
      %389 = vmatprep.subr.mxu0 0.0
      %390 = vmatpush1.msra.mxu0 0.0
      %391 = vmatprep.subr.mxu0 0.0
      %392 = vmatpush1.msra.mxu0 0.0
      %393 = vmatprep.subr.mxu0 0.0
      %394 = vmatpush1.msra.mxu0 0.0
      %395 = vmatprep.subr.mxu0 0.0
      %396 = vmatpush1.msra.mxu0 0.0
      %397 = vmatprep.subr.mxu0 0.0
      %398 = vmatpush1.msra.mxu0 0.0
      %399 = vmatprep.subr.mxu0 0.0
      %400 = vmatpush1.msra.mxu0 0.0
      %401 = vmatprep.subr.mxu0 0.0
      %402 = vmatpush1.msra.mxu0 0.0
      %403 = vmatprep.mubr.f32.mxu0 0.0
      %404 = vmatmul.mubr.f32.gmra.mrb[0].mxu0 %v240
      %v405 = vpop.f32.mrb[0].mxu0
      %v406 = vadd.f32 0.0, %v405
      %v407 = vpop.f32.mrb[0].mxu0
      %408 = vmatprep.mubr.f32.mxu0 0.0
      %409 = vmatmul.mubr.f32.gmra.mrb[0].mxu0 %v243
      %v410 = vpop.f32.mrb[0].mxu0
      %v411 = vadd.f32 0.0, %v410
      %v412 = vpop.f32.mrb[0].mxu0
      %413 = vmatprep.mubr.f32.mxu0 0.0
      %414 = vmatmul.mubr.f32.gmra.mrb[0].mxu0 %v246
      %v415 = vpop.f32.mrb[0].mxu0
      %v416 = vadd.f32 0.0, %v415
      %v417 = vpop.f32.mrb[0].mxu0
      %418 = vmatprep.mubr.f32.mxu0 0.0
      %419 = vmatmul.mubr.f32.gmra.mrb[0].mxu0 %v249
      %v420 = vpop.f32.mrb[0].mxu0
      %v421 = vadd.f32 0.0, %v420
      %v422 = vpop.f32.mrb[0].mxu0
      %423 = vmatprep.mubr.f32.mxu0 0.0
      %424 = vmatmul.mubr.f32.gmra.mrb[0].mxu0 %v252
      %v425 = vpop.f32.mrb[0].mxu0
      %v426 = vadd.f32 0.0, %v425
      %v427 = vpop.f32.mrb[0].mxu0
      %428 = vmatprep.mubr.f32.mxu0 0.0
      %429 = vmatmul.mubr.f32.gmra.mrb[0].mxu0 %v255
      %v430 = vpop.f32.mrb[0].mxu0
      %v431 = vadd.f32 0.0, %v430
      %v432 = vpop.f32.mrb[0].mxu0
      %433 = vmatprep.mubr.f32.mxu0 0.0
      %434 = vmatmul.mubr.f32.gmra.mrb[0].mxu0 %v258
      %v435 = vpop.f32.mrb[0].mxu0
      %v436 = vadd.f32 0.0, %v435
      %v437 = vpop.f32.mrb[0].mxu0
      %438 = vmatprep.mubr.f32.mxu0 0.0
      %439 = vmatmul.mubr.f32.gmra.mrb[0].mxu0 %v261
      %v440 = vpop.f32.mrb[0].mxu0
      %v441 = vadd.f32 0.0, %v440
      %v442 = vpop.f32.mrb[0].mxu0
      %443 = vmatprep.mubr.f32.mxu0 0.0
      %444 = vmatmul.mubr.f32.gmra.mrb[0].mxu0 %v264
      %v445 = vpop.f32.mrb[0].mxu0
      %v446 = vadd.f32 0.0, %v445
      %v447 = vpop.f32.mrb[0].mxu0
      %448 = vmatprep.mubr.f32.mxu0 0.0
      %449 = vmatmul.mubr.f32.gmra.mrb[0].mxu0 %v267
      %v450 = vpop.f32.mrb[0].mxu0
      %v451 = vadd.f32 0.0, %v450
      %v452 = vpop.f32.mrb[0].mxu0
      %453 = vmatprep.mubr.f32.mxu0 0.0
      %454 = vmatmul.mubr.f32.gmra.mrb[0].mxu0 %v270
      %v455 = vpop.f32.mrb[0].mxu0
      %v456 = vadd.f32 0.0, %v455
      %v457 = vpop.f32.mrb[0].mxu0
      %458 = vmatprep.mubr.f32.mxu0 0.0
      %459 = vmatmul.mubr.f32.gmra.mrb[0].mxu0 %v273
      %v460 = vpop.f32.mrb[0].mxu0
      %v461 = vadd.f32 0.0, %v460
      %v462 = vpop.f32.mrb[0].mxu0
      %463 = vmatprep.mubr.f32.mxu0 0.0
      %464 = vmatmul.mubr.f32.gmra.mrb[0].mxu0 %v276
      %v465 = vpop.f32.mrb[0].mxu0
      %v466 = vadd.f32 0.0, %v465
      %v467 = vpop.f32.mrb[0].mxu0
      %468 = vmatprep.mubr.f32.mxu0 0.0
      %469 = vmatmul.mubr.f32.gmra.mrb[0].mxu0 %v279
      %v470 = vpop.f32.mrb[0].mxu0
      %v471 = vadd.f32 0.0, %v470
      %v472 = vpop.f32.mrb[0].mxu0
      %473 = vmatprep.mubr.f32.mxu0 0.0
      %474 = vmatmul.mubr.f32.gmra.mrb[0].mxu0 %v282
      %v475 = vpop.f32.mrb[0].mxu0
      %v476 = vadd.f32 0.0, %v475
      %v477 = vpop.f32.mrb[0].mxu0
      %478 = vmatprep.mubr.f32.mxu0 0.0
      %479 = vmatmul.mubr.f32.gmra.mrb[0].mxu0 %v285
      %v480 = vpop.f32.mrb[0].mxu0
      %v481 = vadd.f32 0.0, %v480
      %v482 = vpop.f32.mrb[0].mxu0
      %483 = vmatprep.mubr.f32.mxu0 0.0
      %484 = vmatmul.mubr.f32.gmra.mrb[0].mxu0 %v288
      %v485 = vpop.f32.mrb[0].mxu0
      %v486 = vadd.f32 0.0, %v485
      %v487 = vpop.f32.mrb[0].mxu0
      %488 = vmatprep.mubr.f32.mxu0 0.0
      %489 = vmatmul.mubr.f32.gmra.mrb[0].mxu0 %v291
      %v490 = vpop.f32.mrb[0].mxu0
      %v491 = vadd.f32 0.0, %v490
      %v492 = vpop.f32.mrb[0].mxu0
      %493 = vmatprep.mubr.f32.mxu0 0.0
      %494 = vmatmul.mubr.f32.gmra.mrb[0].mxu0 %v294
      %v495 = vpop.f32.mrb[0].mxu0
      %v496 = vadd.f32 0.0, %v495
      %v497 = vpop.f32.mrb[0].mxu0
      %498 = vmatprep.mubr.f32.mxu0 0.0
      %499 = vmatmul.mubr.f32.gmra.mrb[0].mxu0 %v297
      %v500 = vpop.f32.mrb[0].mxu0
      %v501 = vadd.f32 0.0, %v500
      %v502 = vpop.f32.mrb[0].mxu0
      %503 = vmatprep.mubr.f32.mxu0 0.0
      %504 = vmatmul.mubr.f32.gmra.mrb[0].mxu0 %v300
      %v505 = vpop.f32.mrb[0].mxu0
      %v506 = vadd.f32 0.0, %v505
      %v507 = vpop.f32.mrb[0].mxu0
      %508 = vmatprep.mubr.f32.mxu0 0.0
      %509 = vmatmul.mubr.f32.gmra.mrb[0].mxu0 %v303
      %v510 = vpop.f32.mrb[0].mxu0
      %v511 = vadd.f32 0.0, %v510
      %v512 = vpop.f32.mrb[0].mxu0
      %513 = vmatprep.mubr.f32.mxu0 0.0
      %514 = vmatmul.mubr.f32.gmra.mrb[0].mxu0 %v306
      %v515 = vpop.f32.mrb[0].mxu0
      %v516 = vadd.f32 0.0, %v515
      %v517 = vpop.f32.mrb[0].mxu0
      %518 = vmatprep.mubr.f32.mxu0 0.0
      %519 = vmatmul.mubr.f32.gmra.mrb[0].mxu0 %v309
      %v520 = vpop.f32.mrb[0].mxu0
      %v521 = vadd.f32 0.0, %v520
      %v522 = vpop.f32.mrb[0].mxu0
      %523 = vmatprep.mubr.f32.mxu0 0.0
      %524 = vmatmul.mubr.f32.gmra.mrb[0].mxu0 %v312
      %v525 = vpop.f32.mrb[0].mxu0
      %v526 = vadd.f32 0.0, %v525
      %v527 = vpop.f32.mrb[0].mxu0
      %528 = vmatprep.mubr.f32.mxu0 0.0
      %529 = vmatmul.mubr.f32.gmra.mrb[0].mxu0 %v315
      %v530 = vpop.f32.mrb[0].mxu0
      %v531 = vadd.f32 0.0, %v530
      %v532 = vpop.f32.mrb[0].mxu0
      %533 = vmatprep.mubr.f32.mxu0 0.0
      %534 = vmatmul.mubr.f32.gmra.mrb[0].mxu0 %v318
      %v535 = vpop.f32.mrb[0].mxu0
      %v536 = vadd.f32 0.0, %v535
      %v537 = vpop.f32.mrb[0].mxu0
      %538 = vmatprep.mubr.f32.mxu0 0.0
      %539 = vmatmul.mubr.f32.gmra.mrb[0].mxu0 %v321
      %v540 = vpop.f32.mrb[0].mxu0
      %v541 = vadd.f32 0.0, %v540
      %v542 = vpop.f32.mrb[0].mxu0
      %543 = vmatprep.mubr.f32.mxu0 0.0
      %544 = vmatmul.mubr.f32.gmra.mrb[0].mxu0 %v324
      %v545 = vpop.f32.mrb[0].mxu0
      %v546 = vadd.f32 0.0, %v545
      %v547 = vpop.f32.mrb[0].mxu0
      %548 = vmatprep.mubr.f32.mxu0 0.0
      %549 = vmatmul.mubr.f32.gmra.mrb[0].mxu0 %v327
      %v550 = vpop.f32.mrb[0].mxu0
      %v551 = vadd.f32 0.0, %v550
      %v552 = vpop.f32.mrb[0].mxu0
      %553 = vmatprep.mubr.f32.mxu0 0.0
      %554 = vmatmul.mubr.f32.gmra.mrb[0].mxu0 %v330
      %v555 = vpop.f32.mrb[0].mxu0
      %v556 = vadd.f32 0.0, %v555
      %v557 = vpop.f32.mrb[0].mxu0
      %558 = vmatprep.mubr.f32.mxu0 0.0
      %559 = vmatmul.mubr.f32.gmra.mrb[0].mxu0 %v333
      %v560 = vpop.f32.mrb[0].mxu0
      %v561 = vadd.f32 0.0, %v560
      %v562 = vpop.f32.mrb[0].mxu0
      %563 = vdwg.mxu0
      %v564 = vld [vmem:[%s2] sm:$0x1]
      %v566 = vlaneseq
      %v567 = vshrl.u32 %v566, 7
      %v568 = vsub.s32 0, %v567
      %v569 = vrot.slane %v564, %v568
      %v571 = vmul.f32 %v406, %v569
      %v572 = vmul.f32 %v411, %v569
      %v573 = vmul.f32 %v416, %v569
      %v574 = vmul.f32 %v421, %v569
      %v575 = vmul.f32 %v426, %v569
      %v576 = vmul.f32 %v431, %v569
      %v577 = vmul.f32 %v436, %v569
      %v578 = vmul.f32 %v441, %v569
      %v579 = vmul.f32 %v446, %v569
      %v580 = vmul.f32 %v451, %v569
      %v581 = vmul.f32 %v456, %v569
      %v582 = vmul.f32 %v461, %v569
      %v583 = vmul.f32 %v466, %v569
      %v584 = vmul.f32 %v471, %v569
      %v585 = vmul.f32 %v476, %v569
      %v586 = vmul.f32 %v481, %v569
      %v587 = vmul.f32 %v486, %v569
      %v588 = vmul.f32 %v491, %v569
      %v589 = vmul.f32 %v496, %v569
      %v590 = vmul.f32 %v501, %v569
      %v591 = vmul.f32 %v506, %v569
      %v592 = vmul.f32 %v511, %v569
      %v593 = vmul.f32 %v516, %v569
      %v594 = vmul.f32 %v521, %v569
      %v595 = vmul.f32 %v526, %v569
      %v596 = vmul.f32 %v531, %v569
      %v597 = vmul.f32 %v536, %v569
      %v598 = vmul.f32 %v541, %v569
      %v599 = vmul.f32 %v546, %v569
      %v600 = vmul.f32 %v551, %v569
      %v601 = vmul.f32 %v556, %v569
      %v602 = vmul.f32 %v561, %v569
      %v603 = vld [vmem:[%s3] sm:$0x1]
      %v605 = vlaneseq
      %v606 = vshrl.u32 %v605, 7
      %v607 = vsub.s32 0, %v606
      %v608 = vrot.slane %v603, %v607
      %v610 = vadd.f32 %v571, %v608
      %v611 = vadd.f32 %v572, %v608
      %v612 = vadd.f32 %v573, %v608
      %v613 = vadd.f32 %v574, %v608
      %v614 = vadd.f32 %v575, %v608
      %v615 = vadd.f32 %v576, %v608
      %v616 = vadd.f32 %v577, %v608
      %v617 = vadd.f32 %v578, %v608
      %v618 = vadd.f32 %v579, %v608
      %v619 = vadd.f32 %v580, %v608
      %v620 = vadd.f32 %v581, %v608
      %v621 = vadd.f32 %v582, %v608
      %v622 = vadd.f32 %v583, %v608
      %v623 = vadd.f32 %v584, %v608
      %v624 = vadd.f32 %v585, %v608
      %v625 = vadd.f32 %v586, %v608
      %v626 = vadd.f32 %v587, %v608
      %v627 = vadd.f32 %v588, %v608
      %v628 = vadd.f32 %v589, %v608
      %v629 = vadd.f32 %v590, %v608
      %v630 = vadd.f32 %v591, %v608
      %v631 = vadd.f32 %v592, %v608
      %v632 = vadd.f32 %v593, %v608
      %v633 = vadd.f32 %v594, %v608
      %v634 = vadd.f32 %v595, %v608
      %v635 = vadd.f32 %v596, %v608
      %v636 = vadd.f32 %v597, %v608
      %v637 = vadd.f32 %v598, %v608
      %v638 = vadd.f32 %v599, %v608
      %v639 = vadd.f32 %v600, %v608
      %v640 = vadd.f32 %v601, %v608
      %v641 = vadd.f32 %v602, %v608
      %v642 = vmax.f32 %v610, 0.0
      %v643 = vmax.f32 %v611, 0.0
      %v644 = vmax.f32 %v612, 0.0
      %v645 = vmax.f32 %v613, 0.0
      %v646 = vmax.f32 %v614, 0.0
      %v647 = vmax.f32 %v615, 0.0
      %v648 = vmax.f32 %v616, 0.0
      %v649 = vmax.f32 %v617, 0.0
      %v650 = vmax.f32 %v618, 0.0
      %v651 = vmax.f32 %v619, 0.0
      %v652 = vmax.f32 %v620, 0.0
      %v653 = vmax.f32 %v621, 0.0
      %v654 = vmax.f32 %v622, 0.0
      %v655 = vmax.f32 %v623, 0.0
      %v656 = vmax.f32 %v624, 0.0
      %v657 = vmax.f32 %v625, 0.0
      %v658 = vmax.f32 %v626, 0.0
      %v659 = vmax.f32 %v627, 0.0
      %v660 = vmax.f32 %v628, 0.0
      %v661 = vmax.f32 %v629, 0.0
      %v662 = vmax.f32 %v630, 0.0
      %v663 = vmax.f32 %v631, 0.0
      %v664 = vmax.f32 %v632, 0.0
      %v665 = vmax.f32 %v633, 0.0
      %v666 = vmax.f32 %v634, 0.0
      %v667 = vmax.f32 %v635, 0.0
      %v668 = vmax.f32 %v636, 0.0
      %v669 = vmax.f32 %v637, 0.0
      %v670 = vmax.f32 %v638, 0.0
      %v671 = vmax.f32 %v639, 0.0
      %v672 = vmax.f32 %v640, 0.0
      %v673 = vmax.f32 %v641, 0.0
      %vm674 = vcmask 64512
      %675 = vst.msk [vmem:[%s199] sm:$0xff] %vm674, %v642
      %676 = vst.msk [vmem:[%s199 + $0x8] sm:$0xff] %vm674, %v643
      %677 = vst.msk [vmem:[%s199 + $0x10] sm:$0xff] %vm674, %v644
      %678 = vst.msk [vmem:[%s199 + $0x18] sm:$0xff] %vm674, %v645
      %679 = vst.msk [vmem:[%s199 + $0x20] sm:$0xff] %vm674, %v646
      %680 = vst.msk [vmem:[%s199 + $0x28] sm:$0xff] %vm674, %v647
      %681 = vst.msk [vmem:[%s199 + $0x30] sm:$0xff] %vm674, %v648
      %682 = vst.msk [vmem:[%s199 + $0x38] sm:$0xff] %vm674, %v649
      %683 = vst.msk [vmem:[%s199 + $0x40] sm:$0xff] %vm674, %v650
      %684 = vst.msk [vmem:[%s199 + $0x48] sm:$0xff] %vm674, %v651
      %685 = vst.msk [vmem:[%s199 + $0x50] sm:$0xff] %vm674, %v652
      %686 = vst.msk [vmem:[%s199 + $0x58] sm:$0xff] %vm674, %v653
      %687 = vst.msk [vmem:[%s199 + $0x60] sm:$0xff] %vm674, %v654
      %688 = vst.msk [vmem:[%s199 + $0x68] sm:$0xff] %vm674, %v655
      %689 = vst.msk [vmem:[%s199 + $0x70] sm:$0xff] %vm674, %v656
      %690 = vst.msk [vmem:[%s199 + $0x78] sm:$0xff] %vm674, %v657
      %691 = vst.msk [vmem:[%s199 + $0x80] sm:$0xff] %vm674, %v658
      %692 = vst.msk [vmem:[%s199 + $0x88] sm:$0xff] %vm674, %v659
      %693 = vst.msk [vmem:[%s199 + $0x90] sm:$0xff] %vm674, %v660
      %694 = vst.msk [vmem:[%s199 + $0x98] sm:$0xff] %vm674, %v661
      %695 = vst.msk [vmem:[%s199 + $0xa0] sm:$0xff] %vm674, %v662
      %696 = vst.msk [vmem:[%s199 + $0xa8] sm:$0xff] %vm674, %v663
      %697 = vst.msk [vmem:[%s199 + $0xb0] sm:$0xff] %vm674, %v664
      %698 = vst.msk [vmem:[%s199 + $0xb8] sm:$0xff] %vm674, %v665
      %699 = vst.msk [vmem:[%s199 + $0xc0] sm:$0xff] %vm674, %v666
      %700 = vst.msk [vmem:[%s199 + $0xc8] sm:$0xff] %vm674, %v667
      %701 = vst.msk [vmem:[%s199 + $0xd0] sm:$0xff] %vm674, %v668
      %702 = vst.msk [vmem:[%s199 + $0xd8] sm:$0xff] %vm674, %v669
      %703 = vst.msk [vmem:[%s199 + $0xe0] sm:$0xff] %vm674, %v670
      %704 = vst.msk [vmem:[%s199 + $0xe8] sm:$0xff] %vm674, %v671
      %705 = vst.msk [vmem:[%s199 + $0xf0] sm:$0xff] %vm674, %v672
      %706 = vst.msk [vmem:[%s199 + $0xf8] sm:$0xff] %vm674, %v673
      %s707 = smul.u32 32, %s15
      %p708 = scmp.lt.s32.totalorder %s707, 63
      %s709 = scalar_select %p708, %s707, 63
      %s710 = smul.addr %s709, 8
      %s711 = scalar_lea.vmem %s4, %s710
      // Predicated region
      $region37: #{tpu_custom_call.1} parent=35 // pred_check
        %p712 = pneg %p122
      $region38: #{tpu_custom_call.1} parent=35 // pred_check_branch
        %714 = sbr.rel (%p712) target = $region40
      $region39: #{tpu_custom_call.1} parent=35 // pred_region
        %s715 = smul.u32 32, %s15
      $region40: #{tpu_custom_call.1} parent=35 // pred_fallthru
        _
    $region36: #{tpu_custom_call.1} parent=5 // pred_fallthru
      _
    %p716 = scmp.le.s32.totalorder 2, %s10
    // Predicated region
    $region41: #{tpu_custom_call.1} parent=5 // pred_check
      %p717 = pneg %p716
    $region42: #{tpu_custom_call.1} parent=5 // pred_check_branch
      %719 = sbr.rel (%p717) target = $region44
    $region43: #{tpu_custom_call.1} parent=5 // pred_region
      %s720 = ssub.s32 %s10, 2
      // Predicated region
      $region45: #{tpu_custom_call.1} parent=43 // pred_check
        %p721 = pneg %p128
      $region46: #{tpu_custom_call.1} parent=43 // pred_check_branch
        %723 = sbr.rel (%p721) target = $region48
      $region47: #{tpu_custom_call.1} parent=43 // pred_region
        %s724 = smul.u32 32, %s16
        %p725 = scmp.lt.s32.totalorder %s724, 63
        %s726 = scalar_select %p725, %s724, 63
        %s727 = smul.addr %s726, 8
        %s728 = scalar_lea.vmem %s4, %s727
      $region48: #{tpu_custom_call.1} parent=43 // pred_fallthru
        _
    $region44: #{tpu_custom_call.1} parent=5 // pred_fallthru
      _
  $region6: #{tpu_custom_call.1} parent=0 // loop_footer
    %s14 = sadd.s32 1, %s10
  $region7: #{tpu_custom_call.1} parent=0 // loop_footer_branch
    %9 = sbr.rel target = $region3
  $region8: #{tpu_custom_call.1} parent=0 // loop_exit
    _

</llo_original>
